<compile_context>
chip_gen: v7x
topology: tpu7x:2x2x1
jax: 0.10.0
libtpu: 0.0.40
codegen_flags: <defaults>
</compile_context>

<pallas_src>
import jax
import jax.numpy as jnp
from jax.experimental import pallas as pl
from jax.experimental.pallas import tpu as pltpu

_FP8_E4M3_MAX = 448.0           # max finite value of float8_e4m3fn
_TARGET_BLOCK_IN_BYTES = 8 * 1024 * 1024   # ~8 MiB of input per grid step
_MIN_GRID_STEPS = 4             # give v7x's two TCs balanced work
_SMALL_TENSOR_ELEMS = 64 * 1024  # below this, plain XLA clip+cast is faster


def _saturating_cast(x):
    """Pure-JAX saturating cast to float8_e4m3fn (fast path + reference)."""
    if not jnp.issubdtype(x.dtype, jnp.floating):
        x = x.astype(jnp.float32)
    x = jnp.clip(x, -_FP8_E4M3_MAX, _FP8_E4M3_MAX)
    return x.astype(jnp.float8_e4m3fn)


def _fp8_cast_kernel(x_ref, o_ref):
    # Elementwise saturating cast to fp8 e4m3fn (VPU path).
    x = x_ref[...]
    if not jnp.issubdtype(x.dtype, jnp.floating):
        x = x.astype(jnp.float32)
    x = jnp.clip(x, -_FP8_E4M3_MAX, _FP8_E4M3_MAX)
    o_ref[...] = x.astype(jnp.float8_e4m3fn)


def _pick_lanes(total):
    """Widest lane-dense last dim (multiple of 128) that divides `total`."""
    for lanes in (1024, 512, 256, 128):
        if total % lanes == 0:
            return lanes
    return None


def fp8_cast(x, *, force_pallas=False):
    """Pallas implementation of FP8Cast.forward (dtype=float8_e4m3fn)."""
    # Already-fp8 inputs pass through (static dtype check, same as the module).
    if x.dtype in (jnp.float8_e4m3fn, jnp.float8_e5m2):
        return x

    orig_shape = x.shape
    total = x.size

    # Small-tensor fast path: launch overhead dominates, let XLA fuse it.
    if total <= _SMALL_TENSOR_ELEMS and not force_pallas:
        return _saturating_cast(x)

    itemsize = max(jnp.dtype(x.dtype).itemsize, 1)
    lanes = _pick_lanes(total)

    if lanes is None:
        # Cold ragged case: element count not a multiple of 128.  Pad the flat
        # array by < 128 elements.  NOTE: this path costs ~2 extra HBM passes
        # (pad copy + output slice); acceptable because it is rare for real
        # layer activations/weights.
        lanes = 128
        rows = pl.cdiv(total, lanes)
        flat = jnp.ravel(x)
        pad = rows * lanes - total
        flat = jnp.concatenate([flat, jnp.zeros((pad,), dtype=x.dtype)])
        x2d = flat.reshape(rows, lanes)
        padded = True
    else:
        # Metadata-only reshape: no extra HBM pass on input or output.
        rows = total // lanes
        x2d = x.reshape(rows, lanes)
        padded = False

    # Block sizing: ~8 MiB of *input* per step (dtype-aware), tile_rows a
    # multiple of 32 so the fp8 output block is whole (32, 128) native tiles.
    bytes_per_row = lanes * itemsize
    tile_rows = max(32, (_TARGET_BLOCK_IN_BYTES // bytes_per_row) // 32 * 32)

    # Guarantee enough grid steps for v7x's two TensorCores (and decent
    # pipelining) by shrinking the block, keeping the 32-row granularity.
    n_steps = pl.cdiv(rows, tile_rows)
    while n_steps < _MIN_GRID_STEPS and tile_rows > 32:
        tile_rows = max(32, (tile_rows // 2) // 32 * 32)
        n_steps = pl.cdiv(rows, tile_rows)
    if tile_rows > rows:
        tile_rows = rows  # tiny-but-above-threshold case: one full-array block
        n_steps = 1

    grid = (n_steps,)

    # Right-sized scoped VMEM: double-buffered in+out blocks + headroom,
    # never above 32 MiB (v7x has only 64 MiB physical VMEM per TC).
    block_in_bytes = tile_rows * lanes * itemsize
    block_out_bytes = tile_rows * lanes  # fp8 = 1 byte/elem
    vmem_limit = min(
        32 << 20,
        max(16 << 20, 2 * (block_in_bytes + block_out_bytes) + (4 << 20)),
    )

    out2d = pl.pallas_call(
        _fp8_cast_kernel,
        out_shape=jax.ShapeDtypeStruct((rows, lanes), jnp.float8_e4m3fn),
        grid=grid,
        in_specs=[pl.BlockSpec((tile_rows, lanes), lambda i: (i, 0))],
        out_specs=pl.BlockSpec((tile_rows, lanes), lambda i: (i, 0)),
        compiler_params=pltpu.CompilerParams(
            dimension_semantics=("parallel",),
            vmem_limit_bytes=vmem_limit,
        ),
        cost_estimate=pl.CostEstimate(
            flops=3 * total,
            transcendentals=0,
            bytes_accessed=total * (itemsize + 1),
        ),
    )(x2d)

    if padded:
        out = out2d.reshape(-1)[:total].reshape(orig_shape)
    else:
        out = out2d.reshape(orig_shape)
    return out


if __name__ == "__main__":
    key = jax.random.PRNGKey(0)
    k0, k1, k2 = jax.random.split(key, 3)

    # --- 1) Module-scale input (NCHW, batch=2, channels=4, 16x16): small,
    #        exercises the fast path. ---
    x_small = jax.random.normal(k0, (2, 4, 16, 16), dtype=jnp.float32) * 100.0
    out_small = jax.block_until_ready(fp8_cast(x_small))
    ref_small = _saturating_cast(x_small)
    assert out_small.dtype == jnp.float8_e4m3fn
    assert out_small.shape == x_small.shape
    assert jnp.array_equal(out_small.astype(jnp.float32),
                           ref_small.astype(jnp.float32))

    # --- 2) Larger f32 input: exercises the Pallas kernel path. ---
    x_f32 = jax.random.normal(k1, (256, 1024), dtype=jnp.float32) * 300.0
    out_f32 = jax.block_until_ready(fp8_cast(x_f32))
    ref_f32 = _saturating_cast(x_f32)
    assert out_f32.dtype == jnp.float8_e4m3fn
    assert out_f32.shape == x_f32.shape
    assert jnp.array_equal(out_f32.astype(jnp.float32),
                           ref_f32.astype(jnp.float32))

    # --- 3) bf16 input: exercises dtype-aware block sizing in the kernel. ---
    x_bf16 = (jax.random.normal(k2, (512, 512), dtype=jnp.float32) * 300.0
              ).astype(jnp.bfloat16)
    out_bf16 = jax.block_until_ready(fp8_cast(x_bf16))
    ref_bf16 = _saturating_cast(x_bf16)
    assert out_bf16.dtype == jnp.float8_e4m3fn
    assert jnp.array_equal(out_bf16.astype(jnp.float32),
                           ref_bf16.astype(jnp.float32))

    # --- 4) Pass-through path for already-fp8 input. ---
    out_pass = fp8_cast(out_f32)
    assert out_pass.dtype == jnp.float8_e4m3fn
    assert jnp.array_equal(out_pass.astype(jnp.float32),
                           out_f32.astype(jnp.float32))

    print("KERNEL_OK")
</pallas_src>

<mosaic_0001>
module attributes {stable_mosaic.version = 11 : i64} {
  func.func @_fp8_cast_kernel(%arg0: i32, %arg1: memref<64x1024xf32, #tpu.memory_space<vmem>>, %arg2: memref<64x1024xf8E4M3FN, #tpu.memory_space<vmem>>) attributes {dimension_semantics = [#tpu.dimension_semantics<parallel>], iteration_bounds = array<i64: 4>, scalar_prefetch = 0 : i64, scratch_operands = 0 : i64, tpu.core_type = #tpu.core_type<tc>, window_params = [{transform_indices = @transform_0, window_bounds = array<i64: 64, 1024>}, {transform_indices = @transform_1, window_bounds = array<i64: 64, 1024>}]} {
    %c0 = arith.constant 0 : index
    %c0_0 = arith.constant 0 : index
    %0 = vector.load %arg1[%c0, %c0_0] : memref<64x1024xf32, #tpu.memory_space<vmem>>, vector<64x1024xf32>
    %cst = arith.constant -4.480000e+02 : f32
    %cst_1 = arith.constant 4.480000e+02 : f32
    %1 = vector.broadcast %cst : f32 to vector<64x1024xf32>
    %2 = arith.maximumf %1, %0 : vector<64x1024xf32>
    %3 = vector.broadcast %cst_1 : f32 to vector<64x1024xf32>
    %4 = arith.minimumf %3, %2 : vector<64x1024xf32>
    %5 = arith.truncf %4 : vector<64x1024xf32> to vector<64x1024xf8E4M3FN>
    %c0_2 = arith.constant 0 : index
    %c0_3 = arith.constant 0 : index
    %6 = vector.load %arg2[%c0_2, %c0_3] : memref<64x1024xf8E4M3FN, #tpu.memory_space<vmem>>, vector<64x1024xf8E4M3FN>
    tpu.vector_store %arg2[%c0_2, %c0_3], %5 {strides = array<i32>} : memref<64x1024xf8E4M3FN, #tpu.memory_space<vmem>>, vector<64x1024xf8E4M3FN>,
    return
  }
  func.func @transform_0(%arg0: i32) -> (i32, i32) {
    %c0_i32 = arith.constant 0 : i32
    %c0_i32_0 = arith.constant 0 : i32
    return %arg0, %c0_i32 : i32, i32
  }
  func.func @transform_1(%arg0: i32) -> (i32, i32) {
    %c0_i32 = arith.constant 0 : i32
    %c0_i32_0 = arith.constant 0 : i32
    return %arg0, %c0_i32 : i32, i32
  }
}

</mosaic_0001>

<llo_original>
// kernel: tpu_custom_call.1
$region0: #{tpu_custom_call.1}
  #allocation0 [shape = 'u32[]', space=smem, size = 0x4, offset = 0x4, fixed_abs, tag = 'smem constant byte address 0x4 - core index']
  #allocation1 [shape = 'u32[144,128]{1,0:T(1,128)}', space=vmem, size = 0x12000, scoped, tag = 'internal scratch']
  %s0 = inlined_call_operand.hbm [shape: f32[256,1024], index: 0, kind: input, shape index: {}]
  %s1 = inlined_call_operand.hbm [shape: f8e4m3fn[256,1024], index: 1, kind: output, shape index: {}]
  %s2 = sld [smem:[#allocation0]]
  $region41: #{tpu_custom_call.1} parent=0
    _
  %s4 = ssub.s32 1, %s2
  %s5 = scalar_select 0, %s4, %s2
  $region1: #{tpu_custom_call.1} parent=0
    #allocation2 [shape = 'u8[524288]{0}', space=vmem, size = 0x80000, scoped, tag = 'input window, operand 0']
    #allocation3 [shape = 's32[2]{0}', space=sflag, size = 0x8, scoped, tag = 'scoped memory for tpu_custom_call.1']
    #allocation4 [shape = 's32[2]{0}', space=sflag, size = 0x8, scoped, tag = 'scoped memory for tpu_custom_call.1']
    #allocation5 [shape = 'u8[131072]{0}', space=vmem, size = 0x20000, scoped, tag = 'output window, operand 0']
    %6 = vsyncpa [#allocation3], 0
    %s7 = scalar_lea.sflag [#allocation3], 1
    %8 = vsyncpa %s7, 0
    %9 = vsyncpa [#allocation4], 0
    %s10 = scalar_lea.sflag [#allocation4], 1
    %11 = vsyncpa %s10, 0
    loop: start=0, step=1, limit=6
    $region2: #{tpu_custom_call.1} parent=1 // loop_pre_header
      _
    $region3: #{tpu_custom_call.1} parent=1 // loop_header
      %s13 = sphi 0, %s17
      %p14 = scmp.ge.s32.totalorder %s13, 6
      %s23 = sphi 0, %s25
      %s26 = sphi 0, %s23
      %s27 = sphi 0, %s26
      %s43 = sphi 0, %s27
      %s49 = sphi 0, %s51
      %s52 = sphi 0, %s49
      %s53 = sphi 0, %s52
      %s69 = sphi 0, %s53
    $region4: #{tpu_custom_call.1} parent=1 // loop_header_branch
      %16 = sbr.rel (%p14) target = $region8
    $region5: #{tpu_custom_call.1} parent=1 // loop_body
      %s18 = ssub.s32 %s13, 1
      %s19 = ssub.s32 %s13, 2
      %s20 = sadd.s32 %s13, 1
      %s21 = ssub.s32 %s13, %s20
      %p22 = scmp.eq.s32.totalorder %s21, 0
      %s24 = sadd.s32 %s23, 1
      %s25 = scalar_select %p22, %s23, %s24
      %p28 = pneg %p22
      %p29 = scmp.eq.s32.totalorder %s13, 3
      %p30 = por %p28, %p29
      %p31 = scmp.ne.s32.totalorder %s23, %s26
      %p32 = scmp.eq.s32.totalorder %s13, 0
      %p33 = por %p31, %p32
      %p34 = scmp.ne.s32.totalorder %s23, %s26
      %p35 = scmp.eq.s32.totalorder %s18, 3
      %p36 = por %p34, %p35
      %p37 = scmp.ne.s32.totalorder %s26, %s27
      %p38 = scmp.eq.s32.totalorder %s18, 0
      %p39 = por %p37, %p38
      %p40 = scmp.ne.s32.totalorder %s26, %s27
      %p41 = scmp.eq.s32.totalorder %s19, 3
      %p42 = por %p40, %p41
      %p44 = scmp.ne.s32.totalorder %s27, %s43
      %p45 = scmp.eq.s32.totalorder %s19, 0
      %p46 = por %p44, %p45
      %s47 = ssub.s32 %s13, %s20
      %p48 = scmp.eq.s32.totalorder %s47, 0
      %s50 = sadd.s32 %s49, 1
      %s51 = scalar_select %p48, %s49, %s50
      %p54 = pneg %p48
      %p55 = scmp.eq.s32.totalorder %s13, 3
      %p56 = por %p54, %p55
      %p57 = scmp.ne.s32.totalorder %s49, %s52
      %p58 = scmp.eq.s32.totalorder %s13, 0
      %p59 = por %p57, %p58
      %p60 = scmp.ne.s32.totalorder %s49, %s52
      %p61 = scmp.eq.s32.totalorder %s18, 3
      %p62 = por %p60, %p61
      %p63 = scmp.ne.s32.totalorder %s52, %s53
      %p64 = scmp.eq.s32.totalorder %s18, 0
      %p65 = por %p63, %p64
      %p66 = scmp.ne.s32.totalorder %s52, %s53
      %p67 = scmp.eq.s32.totalorder %s19, 3
      %p68 = por %p66, %p67
      %p70 = scmp.ne.s32.totalorder %s53, %s69
      %p71 = scmp.eq.s32.totalorder %s19, 0
      %p72 = por %p70, %p71
      %p73 = scmp.le.s32.totalorder 1, %s13
      %p74 = scmp.lt.s32.totalorder %s13, 5
      %p75 = pnand %p73, %p74
      %p76 = pneg %p75
      // Predicated region
      $region9: #{tpu_custom_call.1} parent=5 // pred_check
        _
      $region10: #{tpu_custom_call.1} parent=5 // pred_check_branch
        %78 = sbr.rel (%p75) target = $region12
      $region11: #{tpu_custom_call.1} parent=5 // pred_region
        %s79 = ssub.s32 %s13, 1
      $region12: #{tpu_custom_call.1} parent=5 // pred_fallthru
        _
      %p80 = scmp.lt.s32.totalorder %s13, 4
      // Predicated region
      $region13: #{tpu_custom_call.1} parent=5 // pred_check
        %p81 = pneg %p80
      $region14: #{tpu_custom_call.1} parent=5 // pred_check_branch
        %83 = sbr.rel (%p81) target = $region16
      $region15: #{tpu_custom_call.1} parent=5 // pred_region
        // Predicated region
        $region17: #{tpu_custom_call.1} parent=15 // pred_check
          %p84 = pneg %p33
        $region18: #{tpu_custom_call.1} parent=15 // pred_check_branch
          %86 = sbr.rel (%p84) target = $region20
        $region19: #{tpu_custom_call.1} parent=15 // pred_region
          %s87 = sand.u32 %s23, 1
          %s88 = scalar_lea.sflag [#allocation3], %s87
          %s89 = sand.u32 %s23, 1
          %s90 = smul.addr %s89, 512
          %s91 = scalar_lea.vmem [#allocation2], %s90
          %s92 = smul.u32 8, %s13
          %s94 = ssub.s32 8192, 8192
          %95 = vsyncadd %s88, %s94
          %s96 = smul.addr %s92, 8
          %s97 = smul.addr %s96, 128
          %s98 = scalar_lea.hbm %s0, %s97
          %s99 = sshll.u32 %s91, 4
          %s100 = int_to_ptr.vmem [resolvable:$true] %s99
          %105 = dma.hbm_to_vmem [thread:$0]  %s98, 8192, %s100, %s88, 1024, 1024, 64
        $region20: #{tpu_custom_call.1} parent=15 // pred_fallthru
          _
      $region16: #{tpu_custom_call.1} parent=5 // pred_fallthru
        _
      %p106 = scmp.le.s32.totalorder 1, %s13
      %p107 = scmp.lt.s32.totalorder %s13, 5
      %p108 = pnand %p106, %p107
      %p109 = pneg %p108
      // Predicated region
      $region21: #{tpu_custom_call.1} parent=5 // pred_check
        _
      $region22: #{tpu_custom_call.1} parent=5 // pred_check_branch
        %111 = sbr.rel (%p108) target = $region24
      $region23: #{tpu_custom_call.1} parent=5 // pred_region
        %s112 = ssub.s32 %s13, 1
        %s113 = sand.u32 %s26, 1
        %s114 = scalar_lea.sflag [#allocation3], %s113
        %s115 = sand.u32 %s26, 1
        %s116 = smul.addr %s115, 512
        %s117 = scalar_lea.vmem [#allocation2], %s116
        // Predicated region
        $region25: #{tpu_custom_call.1} parent=23 // pred_check
          %p118 = pneg %p39
        $region26: #{tpu_custom_call.1} parent=23 // pred_check_branch
          %120 = sbr.rel (%p118) target = $region28
        $region27: #{tpu_custom_call.1} parent=23 // pred_region
          %121 = dma.done %s114, 8192
        $region28: #{tpu_custom_call.1} parent=23 // pred_fallthru
          _
        %s122 = sand.u32 %s26, 1
        %s123 = scalar_lea.sflag [#allocation3], %s122
        %s124 = sand.u32 %s26, 1
        %s125 = smul.addr %s124, 512
        %s126 = scalar_lea.vmem [#allocation2], %s125
        %p127 = pneg %p39
        %p128 = pneg %p36
        %p129 = pneg %p65
        %p130 = pneg %p62
        %s131 = sand.u32 %s52, 1
        %s132 = scalar_lea.sflag [#allocation4], %s131
        %s133 = sand.u32 %s52, 1
        %s134 = smul.addr %s133, 128
        %s135 = scalar_lea.vmem [#allocation5], %s134
        %s136 = smul.u32 8, %s18
        %s137 = smul.u32 2, %s18
        %v138 = vld [vmem:[%s117] sm:$0xff]
        %v139 = vld [vmem:[%s117 + $0x8] sm:$0xff]
        %v140 = vld [vmem:[%s117 + $0x10] sm:$0xff]
        %v141 = vld [vmem:[%s117 + $0x18] sm:$0xff]
        %v142 = vld [vmem:[%s117 + $0x20] sm:$0xff]
        %v143 = vld [vmem:[%s117 + $0x28] sm:$0xff]
        %v144 = vld [vmem:[%s117 + $0x30] sm:$0xff]
        %v145 = vld [vmem:[%s117 + $0x38] sm:$0xff]
        %v146 = vld [vmem:[%s117 + $0x40] sm:$0xff]
        %v147 = vld [vmem:[%s117 + $0x48] sm:$0xff]
        %v148 = vld [vmem:[%s117 + $0x50] sm:$0xff]
        %v149 = vld [vmem:[%s117 + $0x58] sm:$0xff]
        %v150 = vld [vmem:[%s117 + $0x60] sm:$0xff]
        %v151 = vld [vmem:[%s117 + $0x68] sm:$0xff]
        %v152 = vld [vmem:[%s117 + $0x70] sm:$0xff]
        %v153 = vld [vmem:[%s117 + $0x78] sm:$0xff]
        %v154 = vld [vmem:[%s117 + $0x80] sm:$0xff]
        %v155 = vld [vmem:[%s117 + $0x88] sm:$0xff]
        %v156 = vld [vmem:[%s117 + $0x90] sm:$0xff]
        %v157 = vld [vmem:[%s117 + $0x98] sm:$0xff]
        %v158 = vld [vmem:[%s117 + $0xa0] sm:$0xff]
        %v159 = vld [vmem:[%s117 + $0xa8] sm:$0xff]
        %v160 = vld [vmem:[%s117 + $0xb0] sm:$0xff]
        %v161 = vld [vmem:[%s117 + $0xb8] sm:$0xff]
        %v162 = vld [vmem:[%s117 + $0xc0] sm:$0xff]
        %v163 = vld [vmem:[%s117 + $0xc8] sm:$0xff]
        %v164 = vld [vmem:[%s117 + $0xd0] sm:$0xff]
        %v165 = vld [vmem:[%s117 + $0xd8] sm:$0xff]
        %v166 = vld [vmem:[%s117 + $0xe0] sm:$0xff]
        %v167 = vld [vmem:[%s117 + $0xe8] sm:$0xff]
        %v168 = vld [vmem:[%s117 + $0xf0] sm:$0xff]
        %v169 = vld [vmem:[%s117 + $0xf8] sm:$0xff]
        %v170 = vld [vmem:[%s117 + $0x100] sm:$0xff]
        %v171 = vld [vmem:[%s117 + $0x108] sm:$0xff]
        %v172 = vld [vmem:[%s117 + $0x110] sm:$0xff]
        %v173 = vld [vmem:[%s117 + $0x118] sm:$0xff]
        %v174 = vld [vmem:[%s117 + $0x120] sm:$0xff]
        %v175 = vld [vmem:[%s117 + $0x128] sm:$0xff]
        %v176 = vld [vmem:[%s117 + $0x130] sm:$0xff]
        %v177 = vld [vmem:[%s117 + $0x138] sm:$0xff]
        %v178 = vld [vmem:[%s117 + $0x140] sm:$0xff]
        %v179 = vld [vmem:[%s117 + $0x148] sm:$0xff]
        %v180 = vld [vmem:[%s117 + $0x150] sm:$0xff]
        %v181 = vld [vmem:[%s117 + $0x158] sm:$0xff]
        %v182 = vld [vmem:[%s117 + $0x160] sm:$0xff]
        %v183 = vld [vmem:[%s117 + $0x168] sm:$0xff]
        %v184 = vld [vmem:[%s117 + $0x170] sm:$0xff]
        %v185 = vld [vmem:[%s117 + $0x178] sm:$0xff]
        %v186 = vld [vmem:[%s117 + $0x180] sm:$0xff]
        %v187 = vld [vmem:[%s117 + $0x188] sm:$0xff]
        %v188 = vld [vmem:[%s117 + $0x190] sm:$0xff]
        %v189 = vld [vmem:[%s117 + $0x198] sm:$0xff]
        %v190 = vld [vmem:[%s117 + $0x1a0] sm:$0xff]
        %v191 = vld [vmem:[%s117 + $0x1a8] sm:$0xff]
        %v192 = vld [vmem:[%s117 + $0x1b0] sm:$0xff]
        %v193 = vld [vmem:[%s117 + $0x1b8] sm:$0xff]
        %v194 = vld [vmem:[%s117 + $0x1c0] sm:$0xff]
        %v195 = vld [vmem:[%s117 + $0x1c8] sm:$0xff]
        %v196 = vld [vmem:[%s117 + $0x1d0] sm:$0xff]
        %v197 = vld [vmem:[%s117 + $0x1d8] sm:$0xff]
        %v198 = vld [vmem:[%s117 + $0x1e0] sm:$0xff]
        %v199 = vld [vmem:[%s117 + $0x1e8] sm:$0xff]
        %v200 = vld [vmem:[%s117 + $0x1f0] sm:$0xff]
        %v201 = vld [vmem:[%s117 + $0x1f8] sm:$0xff]
        %v202 = vmax.f32 %v138, -448.0
        %v203 = vmax.f32 %v139, -448.0
        %v204 = vmax.f32 %v140, -448.0
        %v205 = vmax.f32 %v141, -448.0
        %v206 = vmax.f32 %v142, -448.0
        %v207 = vmax.f32 %v143, -448.0
        %v208 = vmax.f32 %v144, -448.0
        %v209 = vmax.f32 %v145, -448.0
        %v210 = vmax.f32 %v146, -448.0
        %v211 = vmax.f32 %v147, -448.0
        %v212 = vmax.f32 %v148, -448.0
        %v213 = vmax.f32 %v149, -448.0
        %v214 = vmax.f32 %v150, -448.0
        %v215 = vmax.f32 %v151, -448.0
        %v216 = vmax.f32 %v152, -448.0
        %v217 = vmax.f32 %v153, -448.0
        %v218 = vmax.f32 %v154, -448.0
        %v219 = vmax.f32 %v155, -448.0
        %v220 = vmax.f32 %v156, -448.0
        %v221 = vmax.f32 %v157, -448.0
        %v222 = vmax.f32 %v158, -448.0
        %v223 = vmax.f32 %v159, -448.0
        %v224 = vmax.f32 %v160, -448.0
        %v225 = vmax.f32 %v161, -448.0
        %v226 = vmax.f32 %v162, -448.0
        %v227 = vmax.f32 %v163, -448.0
        %v228 = vmax.f32 %v164, -448.0
        %v229 = vmax.f32 %v165, -448.0
        %v230 = vmax.f32 %v166, -448.0
        %v231 = vmax.f32 %v167, -448.0
        %v232 = vmax.f32 %v168, -448.0
        %v233 = vmax.f32 %v169, -448.0
        %v234 = vmax.f32 %v170, -448.0
        %v235 = vmax.f32 %v171, -448.0
        %v236 = vmax.f32 %v172, -448.0
        %v237 = vmax.f32 %v173, -448.0
        %v238 = vmax.f32 %v174, -448.0
        %v239 = vmax.f32 %v175, -448.0
        %v240 = vmax.f32 %v176, -448.0
        %v241 = vmax.f32 %v177, -448.0
        %v242 = vmax.f32 %v178, -448.0
        %v243 = vmax.f32 %v179, -448.0
        %v244 = vmax.f32 %v180, -448.0
        %v245 = vmax.f32 %v181, -448.0
        %v246 = vmax.f32 %v182, -448.0
        %v247 = vmax.f32 %v183, -448.0
        %v248 = vmax.f32 %v184, -448.0
        %v249 = vmax.f32 %v185, -448.0
        %v250 = vmax.f32 %v186, -448.0
        %v251 = vmax.f32 %v187, -448.0
        %v252 = vmax.f32 %v188, -448.0
        %v253 = vmax.f32 %v189, -448.0
        %v254 = vmax.f32 %v190, -448.0
        %v255 = vmax.f32 %v191, -448.0
        %v256 = vmax.f32 %v192, -448.0
        %v257 = vmax.f32 %v193, -448.0
        %v258 = vmax.f32 %v194, -448.0
        %v259 = vmax.f32 %v195, -448.0
        %v260 = vmax.f32 %v196, -448.0
        %v261 = vmax.f32 %v197, -448.0
        %v262 = vmax.f32 %v198, -448.0
        %v263 = vmax.f32 %v199, -448.0
        %v264 = vmax.f32 %v200, -448.0
        %v265 = vmax.f32 %v201, -448.0
        %v266 = vmin.f32 %v202, 448.0
        %v267 = vmin.f32 %v203, 448.0
        %v268 = vmin.f32 %v204, 448.0
        %v269 = vmin.f32 %v205, 448.0
        %v270 = vmin.f32 %v206, 448.0
        %v271 = vmin.f32 %v207, 448.0
        %v272 = vmin.f32 %v208, 448.0
        %v273 = vmin.f32 %v209, 448.0
        %v274 = vmin.f32 %v210, 448.0
        %v275 = vmin.f32 %v211, 448.0
        %v276 = vmin.f32 %v212, 448.0
        %v277 = vmin.f32 %v213, 448.0
        %v278 = vmin.f32 %v214, 448.0
        %v279 = vmin.f32 %v215, 448.0
        %v280 = vmin.f32 %v216, 448.0
        %v281 = vmin.f32 %v217, 448.0
        %v282 = vmin.f32 %v218, 448.0
        %v283 = vmin.f32 %v219, 448.0
        %v284 = vmin.f32 %v220, 448.0
        %v285 = vmin.f32 %v221, 448.0
        %v286 = vmin.f32 %v222, 448.0
        %v287 = vmin.f32 %v223, 448.0
        %v288 = vmin.f32 %v224, 448.0
        %v289 = vmin.f32 %v225, 448.0
        %v290 = vmin.f32 %v226, 448.0
        %v291 = vmin.f32 %v227, 448.0
        %v292 = vmin.f32 %v228, 448.0
        %v293 = vmin.f32 %v229, 448.0
        %v294 = vmin.f32 %v230, 448.0
        %v295 = vmin.f32 %v231, 448.0
        %v296 = vmin.f32 %v232, 448.0
        %v297 = vmin.f32 %v233, 448.0
        %v298 = vmin.f32 %v234, 448.0
        %v299 = vmin.f32 %v235, 448.0
        %v300 = vmin.f32 %v236, 448.0
        %v301 = vmin.f32 %v237, 448.0
        %v302 = vmin.f32 %v238, 448.0
        %v303 = vmin.f32 %v239, 448.0
        %v304 = vmin.f32 %v240, 448.0
        %v305 = vmin.f32 %v241, 448.0
        %v306 = vmin.f32 %v242, 448.0
        %v307 = vmin.f32 %v243, 448.0
        %v308 = vmin.f32 %v244, 448.0
        %v309 = vmin.f32 %v245, 448.0
        %v310 = vmin.f32 %v246, 448.0
        %v311 = vmin.f32 %v247, 448.0
        %v312 = vmin.f32 %v248, 448.0
        %v313 = vmin.f32 %v249, 448.0
        %v314 = vmin.f32 %v250, 448.0
        %v315 = vmin.f32 %v251, 448.0
        %v316 = vmin.f32 %v252, 448.0
        %v317 = vmin.f32 %v253, 448.0
        %v318 = vmin.f32 %v254, 448.0
        %v319 = vmin.f32 %v255, 448.0
        %v320 = vmin.f32 %v256, 448.0
        %v321 = vmin.f32 %v257, 448.0
        %v322 = vmin.f32 %v258, 448.0
        %v323 = vmin.f32 %v259, 448.0
        %v324 = vmin.f32 %v260, 448.0
        %v325 = vmin.f32 %v261, 448.0
        %v326 = vmin.f32 %v262, 448.0
        %v327 = vmin.f32 %v263, 448.0
        %v328 = vmin.f32 %v264, 448.0
        %v329 = vmin.f32 %v265, 448.0
        %v330 = vpack.c.f32.eXmY %v266, %v274, 61788
        %v334 = vpack.c.f32.eXmY %v282, %v290, 61788
        %v338 = vpack.c.b8 %v334, %v330
        %v340 = vpack.c.f32.eXmY %v267, %v275, 61788
        %v344 = vpack.c.f32.eXmY %v283, %v291, 61788
        %v348 = vpack.c.b8 %v344, %v340
        %v350 = vpack.c.f32.eXmY %v268, %v276, 61788
        %v354 = vpack.c.f32.eXmY %v284, %v292, 61788
        %v358 = vpack.c.b8 %v354, %v350
        %v360 = vpack.c.f32.eXmY %v269, %v277, 61788
        %v364 = vpack.c.f32.eXmY %v285, %v293, 61788
        %v368 = vpack.c.b8 %v364, %v360
        %v370 = vpack.c.f32.eXmY %v270, %v278, 61788
        %v374 = vpack.c.f32.eXmY %v286, %v294, 61788
        %v378 = vpack.c.b8 %v374, %v370
        %v380 = vpack.c.f32.eXmY %v271, %v279, 61788
        %v384 = vpack.c.f32.eXmY %v287, %v295, 61788
        %v388 = vpack.c.b8 %v384, %v380
        %v390 = vpack.c.f32.eXmY %v272, %v280, 61788
        %v394 = vpack.c.f32.eXmY %v288, %v296, 61788
        %v398 = vpack.c.b8 %v394, %v390
        %v400 = vpack.c.f32.eXmY %v273, %v281, 61788
        %v404 = vpack.c.f32.eXmY %v289, %v297, 61788
        %v408 = vpack.c.b8 %v404, %v400
        %v410 = vpack.c.f32.eXmY %v298, %v306, 61788
        %v414 = vpack.c.f32.eXmY %v314, %v322, 61788
        %v418 = vpack.c.b8 %v414, %v410
        %v420 = vpack.c.f32.eXmY %v299, %v307, 61788
        %v424 = vpack.c.f32.eXmY %v315, %v323, 61788
        %v428 = vpack.c.b8 %v424, %v420
        %v430 = vpack.c.f32.eXmY %v300, %v308, 61788
        %v434 = vpack.c.f32.eXmY %v316, %v324, 61788
        %v438 = vpack.c.b8 %v434, %v430
        %v440 = vpack.c.f32.eXmY %v301, %v309, 61788
        %v444 = vpack.c.f32.eXmY %v317, %v325, 61788
        %v448 = vpack.c.b8 %v444, %v440
        %v450 = vpack.c.f32.eXmY %v302, %v310, 61788
        %v454 = vpack.c.f32.eXmY %v318, %v326, 61788
        %v458 = vpack.c.b8 %v454, %v450
        %v460 = vpack.c.f32.eXmY %v303, %v311, 61788
        %v464 = vpack.c.f32.eXmY %v319, %v327, 61788
        %v468 = vpack.c.b8 %v464, %v460
        %v470 = vpack.c.f32.eXmY %v304, %v312, 61788
        %v474 = vpack.c.f32.eXmY %v320, %v328, 61788
        %v478 = vpack.c.b8 %v474, %v470
        %v480 = vpack.c.f32.eXmY %v305, %v313, 61788
        %v484 = vpack.c.f32.eXmY %v321, %v329, 61788
        %v488 = vpack.c.b8 %v484, %v480
        %490 = vst [vmem:[%s135] sm:$0xff] %v338
        %491 = vst [vmem:[%s135 + $0x8] sm:$0xff] %v348
        %492 = vst [vmem:[%s135 + $0x10] sm:$0xff] %v358
        %493 = vst [vmem:[%s135 + $0x18] sm:$0xff] %v368
        %494 = vst [vmem:[%s135 + $0x20] sm:$0xff] %v378
        %495 = vst [vmem:[%s135 + $0x28] sm:$0xff] %v388
        %496 = vst [vmem:[%s135 + $0x30] sm:$0xff] %v398
        %497 = vst [vmem:[%s135 + $0x38] sm:$0xff] %v408
        %498 = vst [vmem:[%s135 + $0x40] sm:$0xff] %v418
        %499 = vst [vmem:[%s135 + $0x48] sm:$0xff] %v428
        %500 = vst [vmem:[%s135 + $0x50] sm:$0xff] %v438
        %501 = vst [vmem:[%s135 + $0x58] sm:$0xff] %v448
        %502 = vst [vmem:[%s135 + $0x60] sm:$0xff] %v458
        %503 = vst [vmem:[%s135 + $0x68] sm:$0xff] %v468
        %504 = vst [vmem:[%s135 + $0x70] sm:$0xff] %v478
        %505 = vst [vmem:[%s135 + $0x78] sm:$0xff] %v488
        %s506 = sand.u32 %s52, 1
        %s507 = scalar_lea.sflag [#allocation4], %s506
        %s508 = sand.u32 %s52, 1
        %s509 = smul.addr %s508, 128
        %s510 = scalar_lea.vmem [#allocation5], %s509
        // Predicated region
        $region29: #{tpu_custom_call.1} parent=23 // pred_check
          %p511 = pneg %p62
        $region30: #{tpu_custom_call.1} parent=23 // pred_check_branch
          %513 = sbr.rel (%p511) target = $region32
        $region31: #{tpu_custom_call.1} parent=23 // pred_region
          %s514 = smul.u32 2, %s18
          %s516 = ssub.s32 2048, 2048
          %517 = vsyncadd %s507, %s516
          %s518 = smul.addr %s514, 8
          %s519 = smul.addr %s518, 128
          %s520 = scalar_lea.hbm %s1, %s519
          %s521 = sshll.u32 %s510, 4
          %s522 = int_to_ptr.vmem [resolvable:$true] %s521
          %527 = dma.vmem_to_hbm [thread:$0]  %s522, 2048, %s520, %s507, 1024, 1024, 64
        $region32: #{tpu_custom_call.1} parent=23 // pred_fallthru
          _
      $region24: #{tpu_custom_call.1} parent=5 // pred_fallthru
        _
      %p528 = scmp.le.s32.totalorder 2, %s13
      // Predicated region
      $region33: #{tpu_custom_call.1} parent=5 // pred_check
        %p529 = pneg %p528
      $region34: #{tpu_custom_call.1} parent=5 // pred_check_branch
        %531 = sbr.rel (%p529) target = $region36
      $region35: #{tpu_custom_call.1} parent=5 // pred_region
        %s532 = ssub.s32 %s13, 2
        // Predicated region
        $region37: #{tpu_custom_call.1} parent=35 // pred_check
          %p533 = pneg %p68
        $region38: #{tpu_custom_call.1} parent=35 // pred_check_branch
          %535 = sbr.rel (%p533) target = $region40
        $region39: #{tpu_custom_call.1} parent=35 // pred_region
          %s536 = sand.u32 %s53, 1
          %s537 = scalar_lea.sflag [#allocation4], %s536
          %s538 = sand.u32 %s53, 1
          %s539 = smul.addr %s538, 128
          %s540 = scalar_lea.vmem [#allocation5], %s539
          %541 = dma.done %s537, 2048
        $region40: #{tpu_custom_call.1} parent=35 // pred_fallthru
          _
      $region36: #{tpu_custom_call.1} parent=5 // pred_fallthru
        _
    $region6: #{tpu_custom_call.1} parent=1 // loop_footer
      %s17 = sadd.s32 1, %s13
    $region7: #{tpu_custom_call.1} parent=1 // loop_footer_branch
      %12 = sbr.rel target = $region3
    $region8: #{tpu_custom_call.1} parent=1 // loop_exit
      _
    %542 = vsyncpa [#allocation3], 1
    %s543 = scalar_lea.sflag [#allocation3], 1
    %544 = vsyncpa %s543, 1
    %545 = vsyncpa [#allocation4], 1
    %s546 = scalar_lea.sflag [#allocation4], 1
    %547 = vsyncpa %s546, 1

</llo_original>
